<compile_context>
chip_gen: v5e
topology: v5e:2x2
jax: 0.10.0
libtpu: 0.0.40
codegen_flags: <defaults>
</compile_context>

<pallas_src>
import jax
import jax.numpy as jnp
from jax import lax
from jax.experimental import pallas as pl
from jax.experimental.pallas import tpu as pltpu

INPUT_SIZE = 1
HIDDEN = 32


def _rnn_kernel(x_ref, h0_ref, wih_ref, whh_ref, bias_ref, wout_ref, bout_ref,
                y_ref, hT_ref):
    """Single invocation = full batched recurrence over T steps.

    x_ref:    (B, T, 1)  inputs (whole batch)
    h0_ref:   (1, B, H)  initial hidden state (PyTorch layout)
    wih_ref:  (1, H)     input->hidden weight row (W_ih^T, I == 1)
    whh_ref:  (H, H)     hidden->hidden weight, pre-transposed (W_hh^T)
    bias_ref: (1, H)     b_ih + b_hh (combined in the wrapper)
    wout_ref: (1, H)     output Linear weight row
    bout_ref: (1,)       output Linear bias (SMEM scalar)
    y_ref:    (1, T*B)   per-step Linear outputs, t-major then b
    hT_ref:   (1, B, H)  final hidden state (PyTorch layout)
    """
    B, T, _ = x_ref.shape

    whh = whh_ref[...]                                   # (H, H), loop-invariant

    # ---- hoisted input projection for ALL (b, t) at once (I == 1 -> VPU only):
    # (B,T,1) * (1,H) + (1,H) -> (B,T,H), kept as a value (vregs, no scratch).
    pre = x_ref[...] * wih_ref[...] + bias_ref[...]

    # ---- serial recurrence over the whole batch:
    #   h = tanh(h @ W_hh^T + pre[:, t, :]) with h: (B, H).
    # Static T -> fully unrolled; per-step hidden states stay in vregs.
    h = h0_ref[0]                                        # (B, H)
    h_steps = []
    for t in range(T):
        h = jnp.tanh(jnp.dot(h, whh, preferred_element_type=jnp.float32)
                     + pre[:, t, :])
        h_steps.append(h)
    hT_ref[0] = h

    # ---- output Linear, deferred to a single matmul + one bulk store:
    # stack step results (t-major) -> (T*B, H); contract over H with the
    # (1, H) weight row -> (1, T*B).
    hs = jnp.concatenate(h_steps, axis=0)                # (T*B, H)
    y = lax.dot_general(wout_ref[...], hs,
                        dimension_numbers=(((1,), (1,)), ((), ())),
                        preferred_element_type=jnp.float32)
    y_ref[...] = y + bout_ref[0]


def init_params(key, input_size=INPUT_SIZE, hidden=HIDDEN):
    """Deterministic init matching PyTorch parameter shapes (U(-1/sqrt(H), 1/sqrt(H)))."""
    ks = jax.random.split(key, 6)
    bound = 1.0 / jnp.sqrt(jnp.float32(hidden))
    u = lambda k, shape: jax.random.uniform(k, shape, jnp.float32, -bound, bound)
    return {
        "w_ih": u(ks[0], (hidden, input_size)),   # weight_ih_l0: (32, 1)
        "w_hh": u(ks[1], (hidden, hidden)),       # weight_hh_l0: (32, 32)
        "b_ih": u(ks[2], (hidden,)),              # bias_ih_l0:   (32,)
        "b_hh": u(ks[3], (hidden,)),              # bias_hh_l0:   (32,)
        "w_out": u(ks[4], (1, hidden)),           # out.weight:   (1, 32)
        "b_out": u(ks[5], (1,)),                  # out.bias:     (1,)
    }


def rnn_forward(x, h_state, params):
    """x: (B, T, 1) float32, h_state: (1, B, 32) or None.
    Returns (outs (B, T, 1), h_state (1, B, 32)) — same as the PyTorch module."""
    x = x.astype(jnp.float32)
    B, T, I = x.shape
    H = params["w_hh"].shape[0]
    # TODO(synk): the hoisted x * W_ih broadcast assumes INPUT_SIZE == 1; I > 1
    # would need a real input matmul inside the kernel.
    assert I == INPUT_SIZE

    if h_state is None:
        h0 = jnp.zeros((1, B, H), jnp.float32)
    else:
        h0 = h_state.astype(jnp.float32)                 # already (1, B, H)

    bias = (params["b_ih"] + params["b_hh"]).reshape(1, H)

    vmem = pl.BlockSpec(memory_space=pltpu.MemorySpace.VMEM)
    smem = pl.BlockSpec(memory_space=pltpu.MemorySpace.SMEM)

    y_flat, hT = pl.pallas_call(
        _rnn_kernel,
        out_shape=(jax.ShapeDtypeStruct((1, T * B), jnp.float32),
                   jax.ShapeDtypeStruct((1, B, H), jnp.float32)),
        in_specs=[
            vmem,   # x        (B, T, 1)
            vmem,   # h0       (1, B, H)
            vmem,   # W_ih^T   (1, H)
            vmem,   # W_hh^T   (H, H)
            vmem,   # bias     (1, H)  = b_ih + b_hh
            vmem,   # out.W    (1, H)
            smem,   # out.b    (1,)    scalar in SMEM
        ],
        out_specs=(vmem, vmem),
    )(
        x,
        h0,
        params["w_ih"].T.reshape(1, H),   # (1, H)
        params["w_hh"].T,                 # (H, H)  -> h @ W_hh^T
        bias,
        params["w_out"].reshape(1, H),    # (1, H)
        params["b_out"].reshape(1),       # (1,)
    )

    # y_flat is (1, T*B), t-major then b  ->  (T, B, 1)  ->  (B, T, 1).
    outs = jnp.transpose(y_flat.reshape(T, B, 1), (1, 0, 2))
    return outs, hT                                       # hT already (1, B, H)


def _reference(x, h_state, params):
    """Pure-JAX reference of the same forward pass (for a sanity check)."""
    B, T, _ = x.shape
    H = params["w_hh"].shape[0]
    h = (jnp.zeros((B, H), jnp.float32) if h_state is None
         else h_state[0].astype(jnp.float32))
    outs = []
    for t in range(T):
        h = jnp.tanh(x[:, t, :] @ params["w_ih"].T + params["b_ih"]
                     + h @ params["w_hh"].T + params["b_hh"])
        outs.append(h @ params["w_out"].T + params["b_out"])
    return jnp.stack(outs, axis=1), h[None]


if __name__ == "__main__":
    key = jax.random.PRNGKey(0)
    k_param, k_x = jax.random.split(key)

    B, T = 2, 8
    params = init_params(k_param)
    x = jax.random.normal(k_x, (B, T, INPUT_SIZE), jnp.float32)

    # First call: h_state=None (module's initial usage).
    outs, h_new = rnn_forward(x, None, params)
    outs = jax.block_until_ready(outs)
    h_new = jax.block_until_ready(h_new)

    ref_outs, ref_h = _reference(x, None, params)
    assert outs.shape == (B, T, 1) and h_new.shape == (1, B, HIDDEN)
    assert jnp.allclose(outs, ref_outs, atol=1e-5)
    assert jnp.allclose(h_new, ref_h, atol=1e-5)

    # Second call: carry the returned hidden state (as the training loop does).
    outs2, h_new2 = rnn_forward(x, h_new, params)
    outs2 = jax.block_until_ready(outs2)
    h_new2 = jax.block_until_ready(h_new2)
    ref_outs2, ref_h2 = _reference(x, ref_h, params)
    assert jnp.allclose(outs2, ref_outs2, atol=1e-5)
    assert jnp.allclose(h_new2, ref_h2, atol=1e-5)

    print("KERNEL_OK")
</pallas_src>

<mosaic_0001>
module attributes {stable_mosaic.version = 11 : i64} {
  func.func @_rnn_kernel(%arg0: memref<2x8x1xf32, #tpu.memory_space<vmem>>, %arg1: memref<1x2x32xf32, #tpu.memory_space<vmem>>, %arg2: memref<1x32xf32, #tpu.memory_space<vmem>>, %arg3: memref<32x32xf32, #tpu.memory_space<vmem>>, %arg4: memref<1x32xf32, #tpu.memory_space<vmem>>, %arg5: memref<1x32xf32, #tpu.memory_space<vmem>>, %arg6: memref<1xf32, #tpu.memory_space<smem>>, %arg7: memref<1x16xf32, #tpu.memory_space<vmem>>, %arg8: memref<1x2x32xf32, #tpu.memory_space<vmem>>) attributes {dimension_semantics = [], scalar_prefetch = 0 : i64, scratch_operands = 0 : i64, tpu.core_type = #tpu.core_type<tc>} {
    %c0 = arith.constant 0 : index
    %c0_0 = arith.constant 0 : index
    %0 = vector.load %arg3[%c0, %c0_0] : memref<32x32xf32, #tpu.memory_space<vmem>>, vector<32x32xf32>
    %c0_1 = arith.constant 0 : index
    %c0_2 = arith.constant 0 : index
    %c0_3 = arith.constant 0 : index
    %1 = vector.load %arg0[%c0_1, %c0_2, %c0_3] : memref<2x8x1xf32, #tpu.memory_space<vmem>>, vector<2x8x1xf32>
    %c0_4 = arith.constant 0 : index
    %c0_5 = arith.constant 0 : index
    %2 = vector.load %arg2[%c0_4, %c0_5] : memref<1x32xf32, #tpu.memory_space<vmem>>, vector<1x32xf32>
    %3 = vector.shape_cast %2 : vector<1x32xf32> to vector<1x1x32xf32>
    %4 = vector.broadcast %1 : vector<2x8x1xf32> to vector<2x8x32xf32>
    %5 = vector.broadcast %3 : vector<1x1x32xf32> to vector<2x8x32xf32>
    %6 = arith.mulf %4, %5 : vector<2x8x32xf32>
    %c0_6 = arith.constant 0 : index
    %c0_7 = arith.constant 0 : index
    %7 = vector.load %arg4[%c0_6, %c0_7] : memref<1x32xf32, #tpu.memory_space<vmem>>, vector<1x32xf32>
    %8 = vector.shape_cast %7 : vector<1x32xf32> to vector<1x1x32xf32>
    %9 = vector.broadcast %8 : vector<1x1x32xf32> to vector<2x8x32xf32>
    %10 = arith.addf %6, %9 : vector<2x8x32xf32>
    %c0_8 = arith.constant 0 : index
    %c0_9 = arith.constant 0 : index
    %c0_10 = arith.constant 0 : index
    %11 = vector.load %arg1[%c0_8, %c0_9, %c0_10] : memref<1x2x32xf32, #tpu.memory_space<vmem>>, vector<1x2x32xf32>
    %12 = vector.shape_cast %11 : vector<1x2x32xf32> to vector<2x32xf32>
    %cst = arith.constant dense<0.000000e+00> : vector<2x32xf32>
    %13 = tpu.matmul %12, %0, %cst {dimension_numbers = #tpu.dot_dimension_numbers<[1], [0], [0], [1], [0, 0, 1, 1], [], []>} : vector<2x32xf32>, vector<32x32xf32>, vector<2x32xf32> -> vector<2x32xf32>
    %14 = vector.extract_strided_slice %10 {offsets = [0, 0, 0], sizes = [2, 1, 32], strides = [1, 1, 1]} : vector<2x8x32xf32> to vector<2x1x32xf32>
    %15 = vector.shape_cast %14 : vector<2x1x32xf32> to vector<2x32xf32>
    %16 = arith.addf %13, %15 : vector<2x32xf32>
    %17 = math.tanh %16 : vector<2x32xf32>
    %cst_11 = arith.constant dense<0.000000e+00> : vector<2x32xf32>
    %18 = tpu.matmul %17, %0, %cst_11 {dimension_numbers = #tpu.dot_dimension_numbers<[1], [0], [0], [1], [0, 0, 1, 1], [], []>} : vector<2x32xf32>, vector<32x32xf32>, vector<2x32xf32> -> vector<2x32xf32>
    %19 = vector.extract_strided_slice %10 {offsets = [0, 1, 0], sizes = [2, 1, 32], strides = [1, 1, 1]} : vector<2x8x32xf32> to vector<2x1x32xf32>
    %20 = vector.shape_cast %19 : vector<2x1x32xf32> to vector<2x32xf32>
    %21 = arith.addf %18, %20 : vector<2x32xf32>
    %22 = math.tanh %21 : vector<2x32xf32>
    %cst_12 = arith.constant dense<0.000000e+00> : vector<2x32xf32>
    %23 = tpu.matmul %22, %0, %cst_12 {dimension_numbers = #tpu.dot_dimension_numbers<[1], [0], [0], [1], [0, 0, 1, 1], [], []>} : vector<2x32xf32>, vector<32x32xf32>, vector<2x32xf32> -> vector<2x32xf32>
    %24 = vector.extract_strided_slice %10 {offsets = [0, 2, 0], sizes = [2, 1, 32], strides = [1, 1, 1]} : vector<2x8x32xf32> to vector<2x1x32xf32>
    %25 = vector.shape_cast %24 : vector<2x1x32xf32> to vector<2x32xf32>
    %26 = arith.addf %23, %25 : vector<2x32xf32>
    %27 = math.tanh %26 : vector<2x32xf32>
    %cst_13 = arith.constant dense<0.000000e+00> : vector<2x32xf32>
    %28 = tpu.matmul %27, %0, %cst_13 {dimension_numbers = #tpu.dot_dimension_numbers<[1], [0], [0], [1], [0, 0, 1, 1], [], []>} : vector<2x32xf32>, vector<32x32xf32>, vector<2x32xf32> -> vector<2x32xf32>
    %29 = vector.extract_strided_slice %10 {offsets = [0, 3, 0], sizes = [2, 1, 32], strides = [1, 1, 1]} : vector<2x8x32xf32> to vector<2x1x32xf32>
    %30 = vector.shape_cast %29 : vector<2x1x32xf32> to vector<2x32xf32>
    %31 = arith.addf %28, %30 : vector<2x32xf32>
    %32 = math.tanh %31 : vector<2x32xf32>
    %cst_14 = arith.constant dense<0.000000e+00> : vector<2x32xf32>
    %33 = tpu.matmul %32, %0, %cst_14 {dimension_numbers = #tpu.dot_dimension_numbers<[1], [0], [0], [1], [0, 0, 1, 1], [], []>} : vector<2x32xf32>, vector<32x32xf32>, vector<2x32xf32> -> vector<2x32xf32>
    %34 = vector.extract_strided_slice %10 {offsets = [0, 4, 0], sizes = [2, 1, 32], strides = [1, 1, 1]} : vector<2x8x32xf32> to vector<2x1x32xf32>
    %35 = vector.shape_cast %34 : vector<2x1x32xf32> to vector<2x32xf32>
    %36 = arith.addf %33, %35 : vector<2x32xf32>
    %37 = math.tanh %36 : vector<2x32xf32>
    %cst_15 = arith.constant dense<0.000000e+00> : vector<2x32xf32>
    %38 = tpu.matmul %37, %0, %cst_15 {dimension_numbers = #tpu.dot_dimension_numbers<[1], [0], [0], [1], [0, 0, 1, 1], [], []>} : vector<2x32xf32>, vector<32x32xf32>, vector<2x32xf32> -> vector<2x32xf32>
    %39 = vector.extract_strided_slice %10 {offsets = [0, 5, 0], sizes = [2, 1, 32], strides = [1, 1, 1]} : vector<2x8x32xf32> to vector<2x1x32xf32>
    %40 = vector.shape_cast %39 : vector<2x1x32xf32> to vector<2x32xf32>
    %41 = arith.addf %38, %40 : vector<2x32xf32>
    %42 = math.tanh %41 : vector<2x32xf32>
    %cst_16 = arith.constant dense<0.000000e+00> : vector<2x32xf32>
    %43 = tpu.matmul %42, %0, %cst_16 {dimension_numbers = #tpu.dot_dimension_numbers<[1], [0], [0], [1], [0, 0, 1, 1], [], []>} : vector<2x32xf32>, vector<32x32xf32>, vector<2x32xf32> -> vector<2x32xf32>
    %44 = vector.extract_strided_slice %10 {offsets = [0, 6, 0], sizes = [2, 1, 32], strides = [1, 1, 1]} : vector<2x8x32xf32> to vector<2x1x32xf32>
    %45 = vector.shape_cast %44 : vector<2x1x32xf32> to vector<2x32xf32>
    %46 = arith.addf %43, %45 : vector<2x32xf32>
    %47 = math.tanh %46 : vector<2x32xf32>
    %cst_17 = arith.constant dense<0.000000e+00> : vector<2x32xf32>
    %48 = tpu.matmul %47, %0, %cst_17 {dimension_numbers = #tpu.dot_dimension_numbers<[1], [0], [0], [1], [0, 0, 1, 1], [], []>} : vector<2x32xf32>, vector<32x32xf32>, vector<2x32xf32> -> vector<2x32xf32>
    %49 = vector.extract_strided_slice %10 {offsets = [0, 7, 0], sizes = [2, 1, 32], strides = [1, 1, 1]} : vector<2x8x32xf32> to vector<2x1x32xf32>
    %50 = vector.shape_cast %49 : vector<2x1x32xf32> to vector<2x32xf32>
    %51 = arith.addf %48, %50 : vector<2x32xf32>
    %52 = math.tanh %51 : vector<2x32xf32>
    %c0_18 = arith.constant 0 : index
    %c0_19 = arith.constant 0 : index
    %c0_20 = arith.constant 0 : index
    %53 = vector.load %arg8[%c0_18, %c0_19, %c0_20] : memref<1x2x32xf32, #tpu.memory_space<vmem>>, vector<1x2x32xf32>
    %54 = vector.shape_cast %53 : vector<1x2x32xf32> to vector<2x32xf32>
    %55 = vector.shape_cast %52 : vector<2x32xf32> to vector<1x2x32xf32>
    tpu.vector_store %arg8[%c0_18, %c0_19, %c0_20], %55 {strides = array<i32>} : memref<1x2x32xf32, #tpu.memory_space<vmem>>, vector<1x2x32xf32>,
    %56 = tpu.concatenate %17, %22, %27, %32, %37, %42, %47, %52 in 0 : vector<2x32xf32>, vector<2x32xf32>, vector<2x32xf32>, vector<2x32xf32>, vector<2x32xf32>, vector<2x32xf32>, vector<2x32xf32>, vector<2x32xf32> -> vector<16x32xf32>
    %c0_21 = arith.constant 0 : index
    %c0_22 = arith.constant 0 : index
    %57 = vector.load %arg5[%c0_21, %c0_22] : memref<1x32xf32, #tpu.memory_space<vmem>>, vector<1x32xf32>
    %cst_23 = arith.constant dense<0.000000e+00> : vector<1x16xf32>
    %58 = tpu.matmul %57, %56, %cst_23 {dimension_numbers = #tpu.dot_dimension_numbers<[1], [1], [0], [0], [0, 0, 1, 0], [], []>} : vector<1x32xf32>, vector<16x32xf32>, vector<1x16xf32> -> vector<1x16xf32>
    %c0_24 = arith.constant 0 : index
    %59 = memref.load %arg6[%c0_24] : memref<1xf32, #tpu.memory_space<smem>>
    %60 = vector.broadcast %59 : f32 to vector<1x16xf32>
    %61 = arith.addf %58, %60 : vector<1x16xf32>
    %c0_25 = arith.constant 0 : index
    %c0_26 = arith.constant 0 : index
    %62 = vector.load %arg7[%c0_25, %c0_26] : memref<1x16xf32, #tpu.memory_space<vmem>>, vector<1x16xf32>
    tpu.vector_store %arg7[%c0_25, %c0_26], %61 {strides = array<i32>} : memref<1x16xf32, #tpu.memory_space<vmem>>, vector<1x16xf32>,
    return
  }
}

</mosaic_0001>

<llo_original>
// kernel: tpu_custom_call.1
$region0: #{tpu_custom_call.1}
  #allocation0 [shape = 'u32[]', space=smem, size = 0x4, offset = 0x4, fixed_abs, tag = 'smem constant byte address 0x4 - core index']
  #allocation1 [shape = 'u32[72,128]{1,0:T(1,128)}', space=vmem, size = 0x9000, scoped, tag = 'internal scratch']
  #allocation2 [shape = 'f32[1]{0:T(128)S(6)}', space=smem, size = 0x200, scoped, tag = 'scoped memory for tpu_custom_call.1']
  %s0 = inlined_call_operand.vmem [shape: f32[2,8,1], index: 0, kind: input, shape index: {}]
  %s1 = inlined_call_operand.vmem [shape: f32[1,2,32], index: 1, kind: input, shape index: {}]
  %s2 = inlined_call_operand.vmem [shape: f32[1,32], index: 2, kind: input, shape index: {}]
  %s3 = inlined_call_operand.hbm [shape: f32[32,32], index: 3, kind: input, shape index: {}]
  %s4 = inlined_call_operand.vmem [shape: f32[1,32], index: 4, kind: input, shape index: {}]
  %s5 = inlined_call_operand.vmem [shape: f32[1,32], index: 5, kind: input, shape index: {}]
  %s6 = inlined_call_operand.<no memory space> [shape: f32[1], index: 6, kind: input, shape index: {}]
  %s7 = inlined_call_operand.hbm [shape: f32[1,16], index: 7, kind: output, shape index: {0}]
  %s8 = inlined_call_operand.hbm [shape: f32[1,2,32], index: 8, kind: output, shape index: {1}]
  %9 = xla_tuple %s7, %s8
  %s10 = sld [smem:[#allocation0]]
  $region50: #{tpu_custom_call.1} parent=0
    _
  %s12 = ssub.s32 1, %s10
  %s13 = scalar_select 0, %s12, %s10
  %14 = sst [smem:[#allocation2]] %s6
  $region1: #{tpu_custom_call.1} parent=0
    #allocation3 [shape = 'u8[16384]{0}', space=vmem, size = 0x4000, scoped, tag = 'input window, operand 3, single buffered']
    #allocation4 [shape = 's32[1]{0}', space=sflag, size = 0x4, scoped, tag = 'scoped memory for tpu_custom_call.1']
    #allocation5 [shape = 's32[1]{0}', space=sflag, size = 0x4, scoped, tag = 'scoped memory for tpu_custom_call.1']
    #allocation6 [shape = 'u8[512]{0}', space=vmem, size = 0x400, scoped, tag = 'output window, operand 0, single buffered']
    #allocation7 [shape = 'u8[1024]{0}', space=vmem, size = 0x400, scoped, tag = 'output window, operand 1, single buffered']
    #allocation8 [shape = 's32[1]{0}', space=sflag, size = 0x4, scoped, tag = 'scoped memory for tpu_custom_call.1']
    %15 = vsyncpa [#allocation4], 0
    %16 = vsyncpa [#allocation5], 0
    %17 = vsyncpa [#allocation8], 0
    // Predicated region
    $region2: #{tpu_custom_call.1} parent=1 // pred_check
      _
    $region3: #{tpu_custom_call.1} parent=1 // pred_check_branch
      %19 = sbr.rel (0) target = $region5
    $region4: #{tpu_custom_call.1} parent=1 // pred_region
      _
    $region5: #{tpu_custom_call.1} parent=1 // pred_fallthru
      _
    // Predicated region
    $region6: #{tpu_custom_call.1} parent=1 // pred_check
      _
    $region7: #{tpu_custom_call.1} parent=1 // pred_check_branch
      %21 = sbr.rel (0) target = $region9
    $region8: #{tpu_custom_call.1} parent=1 // pred_region
      _
    $region9: #{tpu_custom_call.1} parent=1 // pred_fallthru
      _
    // Predicated region
    $region10: #{tpu_custom_call.1} parent=1 // pred_check
      _
    $region11: #{tpu_custom_call.1} parent=1 // pred_check_branch
      %23 = sbr.rel (0) target = $region13
    $region12: #{tpu_custom_call.1} parent=1 // pred_region
      _
    $region13: #{tpu_custom_call.1} parent=1 // pred_fallthru
      _
    // Predicated region
    $region14: #{tpu_custom_call.1} parent=1 // pred_check
      _
    $region15: #{tpu_custom_call.1} parent=1 // pred_check_branch
      %25 = sbr.rel (0) target = $region17
    $region16: #{tpu_custom_call.1} parent=1 // pred_region
      %27 = vsyncadd [#allocation4], 0
      %s28 = sshll.u32 %s3, 4
      %s29 = int_to_ptr.hbm [resolvable:$true] %s28
      %s30 = sshll.u32 [#allocation3], 4
      %s31 = int_to_ptr.vmem [resolvable:$true] %s30
      %36 = dma.hbm_to_vmem [thread:$0]  %s29, 512, %s31, [#allocation4], 128, 128, 8
    $region17: #{tpu_custom_call.1} parent=1 // pred_fallthru
      _
    // Predicated region
    $region18: #{tpu_custom_call.1} parent=1 // pred_check
      _
    $region19: #{tpu_custom_call.1} parent=1 // pred_check_branch
      %38 = sbr.rel (0) target = $region21
    $region20: #{tpu_custom_call.1} parent=1 // pred_region
      _
    $region21: #{tpu_custom_call.1} parent=1 // pred_fallthru
      _
    // Predicated region
    $region22: #{tpu_custom_call.1} parent=1 // pred_check
      _
    $region23: #{tpu_custom_call.1} parent=1 // pred_check_branch
      %40 = sbr.rel (0) target = $region25
    $region24: #{tpu_custom_call.1} parent=1 // pred_region
      _
    $region25: #{tpu_custom_call.1} parent=1 // pred_fallthru
      _
    // Predicated region
    $region26: #{tpu_custom_call.1} parent=1 // pred_check
      _
    $region27: #{tpu_custom_call.1} parent=1 // pred_check_branch
      %42 = sbr.rel (0) target = $region29
    $region28: #{tpu_custom_call.1} parent=1 // pred_region
      _
    $region29: #{tpu_custom_call.1} parent=1 // pred_fallthru
      _
    // Predicated region
    $region30: #{tpu_custom_call.1} parent=1 // pred_check
      _
    $region31: #{tpu_custom_call.1} parent=1 // pred_check_branch
      %44 = sbr.rel (0) target = $region33
    $region32: #{tpu_custom_call.1} parent=1 // pred_region
      %46 = dma.done [#allocation4], 512
    $region33: #{tpu_custom_call.1} parent=1 // pred_fallthru
      _
    %v47 = vld [vmem:[#allocation3] sm:$0xff]
    %v48 = vld [vmem:[#allocation3 + $0x8] sm:$0xff]
    %v49 = vld [vmem:[#allocation3 + $0x10] sm:$0xff]
    %v50 = vld [vmem:[#allocation3 + $0x18] sm:$0xff]
    %v51 = vld [vmem:[%s0] sm:$0xff]
    %v52 = vld [vmem:[%s0 + $0x8] sm:$0xff]
    %v53 = vld [vmem:[%s2] sm:$0x1]
    %55 = vset.pattern.permute.xlu0 0
    %56 = vperm.xlu0 %55, %v51
    %v57 = vpop.permute.xlu0 %56
    %60 = vset.pattern.permute.xlu0 0
    %61 = vperm.xlu0 %60, %v52
    %v62 = vpop.permute.xlu0 %61
    %v65 = vperm.slane %v53, 0
    %v67 = vmul.f32 %v57, %v65
    %v68 = vmul.f32 %v62, %v65
    %v69 = vld [vmem:[%s4] sm:$0x1]
    %v71 = vperm.slane %v69, 0
    %v73 = vadd.f32 %v67, %v71
    %v74 = vadd.f32 %v68, %v71
    %v75 = vld [vmem:[%s1] sm:$0x3]
    %v78 = vrot.slane %v74, 7
    %vm79 = vcmask 1041409
    %v80 = vsel %vm79, %v78, %v73
    %vm82 = vcmask 261120
    %v84 = vsel %vm82, %v75, 0
    %86 = vmatpush.msra.mxu0 0.0
    %87 = vmatpush.msra.mxu0 0.0
    %88 = vmatpush.msra.mxu0 0.0
    %89 = vmatpush.msra.mxu0 0.0
    %90 = vmatpush.msra.mxu0 0.0
    %91 = vmatpush.msra.mxu0 0.0
    %92 = vmatpush.msra.mxu0 0.0
    %93 = vmatpush.msra.mxu0 0.0
    %94 = vmatpush.msra.mxu0 0.0
    %95 = vmatpush.msra.mxu0 0.0
    %96 = vmatpush.msra.mxu0 0.0
    %97 = vmatpush.msra.mxu0 0.0
    %98 = vmatpush.msra.mxu0 %v50
    %99 = vmatpush.msra.mxu0 %v49
    %100 = vmatpush.msra.mxu0 %v48
    %101 = vmatpush.msra.mxu0 %v47
    %102 = vmatmul.f32.gmra.mxu0 %v84
    %v103 = vpop.f32.mrf.mxu0
    %v104 = vadd.f32 %v80, %v103
    %105 = vdwg.mxu0
    %v106 = vtanh.pop %v104
    %v107 = vrot.slane %v73, 1
    %v108 = vsel %vm79, %v74, %v107
    %v111 = vsel %vm82, %v106, 0
    %113 = vmatpush.msra.mxu0 0.0
    %114 = vmatpush.msra.mxu0 0.0
    %115 = vmatpush.msra.mxu0 0.0
    %116 = vmatpush.msra.mxu0 0.0
    %117 = vmatpush.msra.mxu0 0.0
    %118 = vmatpush.msra.mxu0 0.0
    %119 = vmatpush.msra.mxu0 0.0
    %120 = vmatpush.msra.mxu0 0.0
    %121 = vmatpush.msra.mxu0 0.0
    %122 = vmatpush.msra.mxu0 0.0
    %123 = vmatpush.msra.mxu0 0.0
    %124 = vmatpush.msra.mxu0 0.0
    %125 = vmatpush.msra.mxu0 %v50
    %126 = vmatpush.msra.mxu0 %v49
    %127 = vmatpush.msra.mxu0 %v48
    %128 = vmatpush.msra.mxu0 %v47
    %129 = vmatmul.f32.gmra.mxu0 %v111
    %v130 = vpop.f32.mrf.mxu0
    %v131 = vadd.f32 %v108, %v130
    %132 = vdwg.mxu0
    %v133 = vtanh.pop %v131
    %v134 = vrot.slane %v73, 2
    %v135 = vrot.slane %v74, 1
    %v136 = vsel %vm79, %v135, %v134
    %v139 = vsel %vm82, %v133, 0
    %141 = vmatpush.msra.mxu0 0.0
    %142 = vmatpush.msra.mxu0 0.0
    %143 = vmatpush.msra.mxu0 0.0
    %144 = vmatpush.msra.mxu0 0.0
    %145 = vmatpush.msra.mxu0 0.0
    %146 = vmatpush.msra.mxu0 0.0
    %147 = vmatpush.msra.mxu0 0.0
    %148 = vmatpush.msra.mxu0 0.0
    %149 = vmatpush.msra.mxu0 0.0
    %150 = vmatpush.msra.mxu0 0.0
    %151 = vmatpush.msra.mxu0 0.0
    %152 = vmatpush.msra.mxu0 0.0
    %153 = vmatpush.msra.mxu0 %v50
    %154 = vmatpush.msra.mxu0 %v49
    %155 = vmatpush.msra.mxu0 %v48
    %156 = vmatpush.msra.mxu0 %v47
    %157 = vmatmul.f32.gmra.mxu0 %v139
    %v158 = vpop.f32.mrf.mxu0
    %v159 = vadd.f32 %v136, %v158
    %160 = vdwg.mxu0
    %v161 = vtanh.pop %v159
    %v162 = vrot.slane %v73, 3
    %v163 = vrot.slane %v74, 2
    %v164 = vsel %vm79, %v163, %v162
    %v167 = vsel %vm82, %v161, 0
    %169 = vmatpush.msra.mxu0 0.0
    %170 = vmatpush.msra.mxu0 0.0
    %171 = vmatpush.msra.mxu0 0.0
    %172 = vmatpush.msra.mxu0 0.0
    %173 = vmatpush.msra.mxu0 0.0
    %174 = vmatpush.msra.mxu0 0.0
    %175 = vmatpush.msra.mxu0 0.0
    %176 = vmatpush.msra.mxu0 0.0
    %177 = vmatpush.msra.mxu0 0.0
    %178 = vmatpush.msra.mxu0 0.0
    %179 = vmatpush.msra.mxu0 0.0
    %180 = vmatpush.msra.mxu0 0.0
    %181 = vmatpush.msra.mxu0 %v50
    %182 = vmatpush.msra.mxu0 %v49
    %183 = vmatpush.msra.mxu0 %v48
    %184 = vmatpush.msra.mxu0 %v47
    %185 = vmatmul.f32.gmra.mxu0 %v167
    %v186 = vpop.f32.mrf.mxu0
    %v187 = vadd.f32 %v164, %v186
    %188 = vdwg.mxu0
    %v189 = vtanh.pop %v187
    %v190 = vrot.slane %v73, 4
    %v191 = vrot.slane %v74, 3
    %v192 = vsel %vm79, %v191, %v190
    %v195 = vsel %vm82, %v189, 0
    %197 = vmatpush.msra.mxu0 0.0
    %198 = vmatpush.msra.mxu0 0.0
    %199 = vmatpush.msra.mxu0 0.0
    %200 = vmatpush.msra.mxu0 0.0
    %201 = vmatpush.msra.mxu0 0.0
    %202 = vmatpush.msra.mxu0 0.0
    %203 = vmatpush.msra.mxu0 0.0
    %204 = vmatpush.msra.mxu0 0.0
    %205 = vmatpush.msra.mxu0 0.0
    %206 = vmatpush.msra.mxu0 0.0
    %207 = vmatpush.msra.mxu0 0.0
    %208 = vmatpush.msra.mxu0 0.0
    %209 = vmatpush.msra.mxu0 %v50
    %210 = vmatpush.msra.mxu0 %v49
    %211 = vmatpush.msra.mxu0 %v48
    %212 = vmatpush.msra.mxu0 %v47
    %213 = vmatmul.f32.gmra.mxu0 %v195
    %v214 = vpop.f32.mrf.mxu0
    %v215 = vadd.f32 %v192, %v214
    %216 = vdwg.mxu0
    %v217 = vtanh.pop %v215
    %v218 = vrot.slane %v73, 5
    %v219 = vrot.slane %v74, 4
    %v220 = vsel %vm79, %v219, %v218
    %v223 = vsel %vm82, %v217, 0
    %225 = vmatpush.msra.mxu0 0.0
    %226 = vmatpush.msra.mxu0 0.0
    %227 = vmatpush.msra.mxu0 0.0
    %228 = vmatpush.msra.mxu0 0.0
    %229 = vmatpush.msra.mxu0 0.0
    %230 = vmatpush.msra.mxu0 0.0
    %231 = vmatpush.msra.mxu0 0.0
    %232 = vmatpush.msra.mxu0 0.0
    %233 = vmatpush.msra.mxu0 0.0
    %234 = vmatpush.msra.mxu0 0.0
    %235 = vmatpush.msra.mxu0 0.0
    %236 = vmatpush.msra.mxu0 0.0
    %237 = vmatpush.msra.mxu0 %v50
    %238 = vmatpush.msra.mxu0 %v49
    %239 = vmatpush.msra.mxu0 %v48
    %240 = vmatpush.msra.mxu0 %v47
    %241 = vmatmul.f32.gmra.mxu0 %v223
    %v242 = vpop.f32.mrf.mxu0
    %v243 = vadd.f32 %v220, %v242
    %244 = vdwg.mxu0
    %v245 = vtanh.pop %v243
    %v246 = vrot.slane %v73, 6
    %v247 = vrot.slane %v74, 5
    %v248 = vsel %vm79, %v247, %v246
    %v251 = vsel %vm82, %v245, 0
    %253 = vmatpush.msra.mxu0 0.0
    %254 = vmatpush.msra.mxu0 0.0
    %255 = vmatpush.msra.mxu0 0.0
    %256 = vmatpush.msra.mxu0 0.0
    %257 = vmatpush.msra.mxu0 0.0
    %258 = vmatpush.msra.mxu0 0.0
    %259 = vmatpush.msra.mxu0 0.0
    %260 = vmatpush.msra.mxu0 0.0
    %261 = vmatpush.msra.mxu0 0.0
    %262 = vmatpush.msra.mxu0 0.0
    %263 = vmatpush.msra.mxu0 0.0
    %264 = vmatpush.msra.mxu0 0.0
    %265 = vmatpush.msra.mxu0 %v50
    %266 = vmatpush.msra.mxu0 %v49
    %267 = vmatpush.msra.mxu0 %v48
    %268 = vmatpush.msra.mxu0 %v47
    %269 = vmatmul.f32.gmra.mxu0 %v251
    %v270 = vpop.f32.mrf.mxu0
    %v271 = vadd.f32 %v248, %v270
    %272 = vdwg.mxu0
    %v273 = vtanh.pop %v271
    %v274 = vrot.slane %v73, 7
    %v275 = vrot.slane %v74, 6
    %v276 = vsel %vm79, %v275, %v274
    %v279 = vsel %vm82, %v273, 0
    %281 = vmatpush.msra.mxu0 0.0
    %282 = vmatpush.msra.mxu0 0.0
    %283 = vmatpush.msra.mxu0 0.0
    %284 = vmatpush.msra.mxu0 0.0
    %285 = vmatpush.msra.mxu0 0.0
    %286 = vmatpush.msra.mxu0 0.0
    %287 = vmatpush.msra.mxu0 0.0
    %288 = vmatpush.msra.mxu0 0.0
    %289 = vmatpush.msra.mxu0 0.0
    %290 = vmatpush.msra.mxu0 0.0
    %291 = vmatpush.msra.mxu0 0.0
    %292 = vmatpush.msra.mxu0 0.0
    %293 = vmatpush.msra.mxu0 %v50
    %294 = vmatpush.msra.mxu0 %v49
    %295 = vmatpush.msra.mxu0 %v48
    %296 = vmatpush.msra.mxu0 %v47
    %297 = vmatmul.f32.gmra.mxu0 %v279
    %v298 = vpop.f32.mrf.mxu0
    %v299 = vadd.f32 %v276, %v298
    %300 = vdwg.mxu0
    %v301 = vtanh.pop %v299
    %vm302 = vcmask 254976
    %303 = vst.msk [vmem:[#allocation7] sm:$0x3] %vm302, %v301
    %v304 = vrot.slane %v133, 6
    %v306 = vrot.slane %v161, 4
    %v308 = vrot.slane %v189, 2
    %v310 = vrot.slane %v245, 6
    %v312 = vrot.slane %v273, 4
    %v315 = vrot.slane %v301, 2
    %vm317 = vcmask 1041408
    %v318 = vsel %vm317, %v106, %v304
    %vm319 = vcmask 1043456
    %v320 = vsel %vm319, %v318, %v306
    %vm321 = vcmask 1045504
    %v322 = vsel %vm321, %v320, %v308
    %v323 = vsel %vm317, %v217, %v310
    %v324 = vsel %vm319, %v323, %v312
    %v325 = vsel %vm321, %v324, %v315
    %v326 = vld [vmem:[%s5] sm:$0x1]
    %s327 = sld [smem:[#allocation2]]
    %v328 = vstv %s327
    %v330 = vsel %vm82, %v326, 0
    %v333 = vsel %vm82, %v322, 0
    %v336 = vsel %vm82, %v325, 0
    %338 = vmatpush.xpose.msra.mxu0 0.0
    %339 = vmatpush.xpose.msra.mxu0 0.0
    %340 = vmatpush.xpose.msra.mxu0 0.0
    %341 = vmatpush.xpose.msra.mxu0 0.0
    %342 = vmatpush.xpose.msra.mxu0 0.0
    %343 = vmatpush.xpose.msra.mxu0 0.0
    %344 = vmatpush.xpose.msra.mxu0 0.0
    %345 = vmatpush.xpose.msra.mxu0 0.0
    %346 = vmatpush.xpose.msra.mxu0 0.0
    %347 = vmatpush.xpose.msra.mxu0 0.0
    %348 = vmatpush.xpose.msra.mxu0 0.0
    %349 = vmatpush.xpose.msra.mxu0 0.0
    %350 = vmatpush.xpose.msra.mxu0 0.0
    %351 = vmatpush.xpose.msra.mxu0 0.0
    %352 = vmatpush.xpose.msra.mxu0 %v336
    %353 = vmatpush.xpose.msra.mxu0 %v333
    %354 = vmatmul.f32.gmra.mxu0 %v330
    %v355 = vpop.f32.mrf.mxu0
    %v356 = vadd.f32 %v328, %v355
    %357 = vdwg.mxu0
    %vm358 = vcmask 122880
    %359 = vst.msk [vmem:[#allocation6] sm:$0x1] %vm358, %v356
    // Predicated region
    $region34: #{tpu_custom_call.1} parent=1 // pred_check
      _
    $region35: #{tpu_custom_call.1} parent=1 // pred_check_branch
      %361 = sbr.rel (0) target = $region37
    $region36: #{tpu_custom_call.1} parent=1 // pred_region
      %363 = vsyncadd [#allocation5], 0
      %s365 = sshll.u32 [#allocation6], 4
      %s366 = int_to_ptr.vmem [resolvable:$true] %s365
      %s367 = sshll.u32 %s7, 4
      %s368 = int_to_ptr.hbm [resolvable:$true] %s367
      %370 = dma.vmem_to_hbm [thread:$0]  %s366, 16, %s368, [#allocation5]
    $region37: #{tpu_custom_call.1} parent=1 // pred_fallthru
      _
    // Predicated region
    $region38: #{tpu_custom_call.1} parent=1 // pred_check
      _
    $region39: #{tpu_custom_call.1} parent=1 // pred_check_branch
      %372 = sbr.rel (0) target = $region41
    $region40: #{tpu_custom_call.1} parent=1 // pred_region
      %374 = vsyncadd [#allocation8], 0
      %s376 = sshll.u32 [#allocation7], 4
      %s377 = int_to_ptr.vmem [resolvable:$true] %s376
      %s378 = sshll.u32 %s8, 4
      %s379 = int_to_ptr.hbm [resolvable:$true] %s378
      %381 = dma.vmem_to_hbm [thread:$0]  %s377, 32, %s379, [#allocation8]
    $region41: #{tpu_custom_call.1} parent=1 // pred_fallthru
      _
    // Predicated region
    $region42: #{tpu_custom_call.1} parent=1 // pred_check
      _
    $region43: #{tpu_custom_call.1} parent=1 // pred_check_branch
      %383 = sbr.rel (0) target = $region45
    $region44: #{tpu_custom_call.1} parent=1 // pred_region
      %385 = dma.done [#allocation5], 16
    $region45: #{tpu_custom_call.1} parent=1 // pred_fallthru
      _
    // Predicated region
    $region46: #{tpu_custom_call.1} parent=1 // pred_check
      _
    $region47: #{tpu_custom_call.1} parent=1 // pred_check_branch
      %387 = sbr.rel (0) target = $region49
    $region48: #{tpu_custom_call.1} parent=1 // pred_region
      %389 = dma.done [#allocation8], 32
    $region49: #{tpu_custom_call.1} parent=1 // pred_fallthru
      _
    %390 = vsyncpa [#allocation4], 1
    %391 = vsyncpa [#allocation5], 1
    %392 = vsyncpa [#allocation8], 1

</llo_original>
